<compile_context>
chip_gen: v7x
topology: tpu7x:2x2x1
jax: 0.10.0
libtpu: 0.0.40
codegen_flags: <defaults>
</compile_context>

<pallas_src>
import math
import functools

import numpy as np
import jax
import jax.numpy as jnp
from jax.experimental import pallas as pl
from jax.experimental.pallas import tpu as pltpu

# ----------------------------- configuration --------------------------------
B = 2                    # number of sketches in the batch
N = 128                  # points per sketch (== one grid step == one row tile)
BN = B * N               # total nodes (x: (BN, F) like the reference)
IN_FEATURE = 4           # opt.in_feature
CHANNELS = 32            # opt.channels
N_BLOCKS = 4             # opt.n_blocks
POOL_CHANNELS = 32       # opt.pool_channels (fusion_type == 'max')
MLP_SEGMENT = [64]       # opt.mlp_segment
OUT_SEGMENT = 8          # opt.out_segment
K_NEIGHBORS = 8          # opt.local_k / opt.global_k (ring neighbors)

BACKBONE_CH = CHANNELS * (N_BLOCKS + 1)          # 160 per branch
SEGMENT_IN = BACKBONE_CH + POOL_CHANNELS         # 192
GROUPS = N_BLOCKS + 1                            # head + N_BLOCKS conv groups
GW = 2 * CHANNELS                                # 64 fused [local|global] lanes per group
CW = GW * GROUPS                                 # 320 fused accumulator lanes
NBR_CW = GW * N_BLOCKS                           # 256 neighbor-max lanes (last group unused)

# invariants the in-kernel roll / per-sketch pooling rely on
assert N == 128, "one grid step must hold exactly one sketch"
assert K_NEIGHBORS & (K_NEIGHBORS - 1) == 0, "doubling neighbor-max needs power-of-2 K"


# accumulator lane layout: group j (j=0 is the head) occupies lanes
# [64j, 64j+32) for the local branch and [64j+32, 64j+64) for the global branch.
def _lpos(n_groups):
    return np.concatenate([np.arange(CHANNELS) + GW * j for j in range(n_groups)])


def _gpos(n_groups):
    return np.concatenate([np.arange(CHANNELS) + GW * j + CHANNELS for j in range(n_groups)])


# ------------------------------ Pallas kernel --------------------------------
@functools.lru_cache(maxsize=None)
def _probe_roll_convention():
    """True iff pltpu.roll follows np.roll semantics (roll(v, s)[i] == v[(i - s) % n]).

    lru_cached: the probe compiles/dispatches at most once per process.
    """
    def k(x_ref, o_ref):
        o_ref[...] = pltpu.roll(x_ref[...], 1, 0)
    x = jnp.arange(8 * 128, dtype=jnp.float32).reshape(8, 128)
    y = pl.pallas_call(k, out_shape=jax.ShapeDtypeStruct((8, 128), jnp.float32))(x)
    return bool(y[1, 0] == x[0, 0])


def _shift_for_offset(k, np_roll):
    # roll amount realizing "row i sees row (i + k) % N" under the probed convention
    return (N - k) if np_roll else k


def _neighbor_max(v, np_roll):
    """Column-wise max over ring neighbors i+1 .. i+K (mod N) of each row i (XLU rolls)."""
    m = pltpu.roll(v, _shift_for_offset(1, np_roll), 0)          # covers offset {1}
    span = 1
    while span < K_NEIGHBORS:                                    # {1..s} -> {1..2s}
        m = jnp.maximum(m, pltpu.roll(m, _shift_for_offset(span, np_roll), 0))
        span *= 2
    return m


def _fused_kernel(*refs, np_roll):
    x_ref, wsh_ref, wnh_ref, bh_ref = refs[0:4]
    wsb_refs = refs[4:4 + N_BLOCKS]
    wnb_refs = refs[4 + N_BLOCKS:4 + 2 * N_BLOCKS]
    i0 = 4 + 2 * N_BLOCKS
    (bb_ref, wpool_ref, bpool_ref, w1a_ref, w1b_ref, b1_ref,
     w2_ref, b2_ref, o_ref, acc_ref, nbr_ref) = refs[i0:i0 + 11]

    f32, bf16 = jnp.float32, jnp.bfloat16

    # ---- fused local+global head: (N, 4) -> group 0 = [L_0 | G_0] ---------------
    x = x_ref[...]
    xn = _neighbor_max(x, np_roll)
    head = jnp.dot(x.astype(bf16), wsh_ref[...], preferred_element_type=f32)
    head += jnp.dot(xn.astype(bf16), wnh_ref[...], preferred_element_type=f32)
    head = jnp.maximum(head + bh_ref[...], 0.0)                  # (N, 64) f32
    acc_ref[:, 0:GW] = head.astype(bf16)
    nbr_ref[:, 0:GW] = _neighbor_max(head, np_roll).astype(bf16)  # incremental nbr-max

    # ---- N_BLOCKS fused (local+global) blocks, truncated contraction prefixes ----
    for i in range(N_BLOCKS):
        kcur = GW * (i + 1)
        cur = acc_ref[:, :kcur]                                  # (N, 64*(i+1)) bf16
        nbr = nbr_ref[:, :kcur]
        z = jnp.dot(cur, wsb_refs[i][...], preferred_element_type=f32)
        z += jnp.dot(nbr, wnb_refs[i][...], preferred_element_type=f32)
        z = jnp.maximum(z + bb_ref[i], 0.0)                      # (N, 64) f32
        acc_ref[:, kcur:kcur + GW] = z.astype(bf16)
        if i + 1 < N_BLOCKS:                                     # last group's nbr-max unused
            nbr_ref[:, kcur:kcur + GW] = _neighbor_max(z, np_roll).astype(bf16)

    feat = acc_ref[...]                                          # (N, 320) bf16

    # ---- MaxPool fusion: project global channels, per-sketch max ------------------
    # TODO(synk): reference MaxPool pools over stroke_idx then batch; we pool per
    # sketch only (one grid step == one sketch).
    p = jnp.dot(feat, wpool_ref[...], preferred_element_type=f32) + bpool_ref[...]
    p = jnp.maximum(p, 0.0)                                      # (N, 32)
    pooled = jnp.max(p, axis=0, keepdims=True)                   # (1, 32)
    pooled_rows = jnp.broadcast_to(pooled, (N, POOL_CHANNELS)).astype(bf16)

    # ---- segment MLP + classifier + log-softmax -----------------------------------
    # TODO(synk): BatchNorm1d layers of MLPLinear folded as eval-mode identity.
    h = jnp.dot(feat, w1a_ref[...], preferred_element_type=f32)           # local channels
    h += jnp.dot(pooled_rows, w1b_ref[...], preferred_element_type=f32)   # pooled channels
    h = jnp.maximum(h + b1_ref[...], 0.0)                                 # (N, 64)

    z2 = jnp.dot(h.astype(bf16), w2_ref[...], preferred_element_type=f32) + b2_ref[...]
    m = jnp.max(z2, axis=-1, keepdims=True)
    lse = jnp.log(jnp.sum(jnp.exp(z2 - m), axis=-1, keepdims=True)) + m
    o_ref[...] = (z2 - lse).astype(o_ref.dtype)                           # single 8-wide store


def _whole(a):
    zero = (0,) * a.ndim
    return pl.BlockSpec(a.shape, lambda b, _z=zero: _z)   # weights resident in VMEM


def sketch_two_line_forward(x, fp, np_roll=None):
    """Entire SketchTwoLine forward as a single fused pallas_call (grid step == sketch)."""
    if np_roll is None:
        np_roll = _probe_roll_convention()
    weights = ((fp["wsh"], fp["wnh"], fp["bh"])
               + tuple(fp["wsb"]) + tuple(fp["wnb"])
               + (fp["bb"], fp["wpool"], fp["bpool"],
                  fp["w1a"], fp["w1b"], fp["b1"], fp["w2"], fp["b2"]))
    in_specs = [pl.BlockSpec((N, IN_FEATURE), lambda b: (b, 0))]
    in_specs += [_whole(w) for w in weights]
    # TODO(synk): on single-TC v5e/v6e a single-step (B*N)-row grid would shave the
    # per-step pipeline prologue; kept grid=(B,) so v7x maps one sketch per TensorCore.
    return pl.pallas_call(
        functools.partial(_fused_kernel, np_roll=np_roll),
        out_shape=jax.ShapeDtypeStruct((BN, OUT_SEGMENT), jnp.float32),
        grid=(B,),
        in_specs=in_specs,
        out_specs=pl.BlockSpec((N, OUT_SEGMENT), lambda b: (b, 0)),
        scratch_shapes=[pltpu.VMEM((N, CW), jnp.bfloat16),       # feature accumulator
                        pltpu.VMEM((N, NBR_CW), jnp.bfloat16)],  # incremental neighbor-max
        compiler_params=pltpu.CompilerParams(dimension_semantics=("parallel",)),
    )(x, *weights)


# ------------------------------ parameter init --------------------------------
def _dense(key, cin, cout):
    k1, k2 = jax.random.split(key)
    w = jax.random.normal(k1, (cin, cout), jnp.float32) / math.sqrt(cin)
    b = 0.01 * jax.random.normal(k2, (1, cout), jnp.float32)
    return w, b


def _graph(key, cin, cout):
    k1, k2 = jax.random.split(key)
    ws, b = _dense(k1, cin, cout)
    wn, _ = _dense(k2, cin, cout)
    return ws, wn, b


def init_params(key):
    keys = jax.random.split(key, 16)
    params = {}
    for branch, base in (("local", 0), ("global", 6)):
        head = _graph(keys[base], IN_FEATURE, CHANNELS)
        blocks = []
        for i in range(N_BLOCKS):
            cin = CHANNELS * (i + 1)
            blocks.append(_graph(jax.random.fold_in(keys[base + 1], i), cin, CHANNELS))
        params[branch] = {"head": head, "blocks": blocks}
    params["pool"] = _dense(keys[12], BACKBONE_CH, POOL_CHANNELS)
    params["seg1"] = _dense(keys[13], SEGMENT_IN, MLP_SEGMENT[0])
    params["seg2"] = _dense(keys[14], MLP_SEGMENT[-1], OUT_SEGMENT)
    return params


def pack_params(params):
    """Fuse the per-branch weights into the interleaved accumulator layout (bf16).

    Block weights are NOT zero-padded along the contraction: block i gets a
    (64*(i+1), 64) weight matching the populated accumulator prefix.
    """
    bf16 = jnp.bfloat16
    ws_l, wn_l, b_l = params["local"]["head"]
    ws_g, wn_g, b_g = params["global"]["head"]
    wsh = jnp.concatenate([ws_l, ws_g], axis=1).astype(bf16)            # (4, 64)
    wnh = jnp.concatenate([wn_l, wn_g], axis=1).astype(bf16)
    bh = jnp.concatenate([b_l, b_g], axis=1)                            # (1, 64) f32

    wsb, wnb, bb = [], [], []
    for i in range(N_BLOCKS):
        ws_li, wn_li, b_li = params["local"]["blocks"][i]               # (32*(i+1), 32)
        ws_gi, wn_gi, b_gi = params["global"]["blocks"][i]
        k = GW * (i + 1)
        lp, gp = _lpos(i + 1), _gpos(i + 1)
        ws = jnp.zeros((k, GW), jnp.float32)
        ws = ws.at[lp, :CHANNELS].set(ws_li).at[gp, CHANNELS:].set(ws_gi)
        wn = jnp.zeros((k, GW), jnp.float32)
        wn = wn.at[lp, :CHANNELS].set(wn_li).at[gp, CHANNELS:].set(wn_gi)
        wsb.append(ws.astype(bf16))                                     # (64*(i+1), 64)
        wnb.append(wn.astype(bf16))
        bb.append(jnp.concatenate([b_li, b_gi], axis=1))
    bb = jnp.stack(bb)                                                  # (4, 1, 64) f32

    wp, bp = params["pool"]
    wpool = jnp.zeros((CW, POOL_CHANNELS), jnp.float32).at[_gpos(GROUPS)].set(wp).astype(bf16)

    w1, b1 = params["seg1"]
    w1a = jnp.zeros((CW, MLP_SEGMENT[0]), jnp.float32).at[_lpos(GROUPS)].set(
        w1[:BACKBONE_CH]).astype(bf16)
    w1b = w1[BACKBONE_CH:].astype(bf16)                                 # (32, 64)

    w2, b2 = params["seg2"]
    return dict(wsh=wsh, wnh=wnh, bh=bh, wsb=tuple(wsb), wnb=tuple(wnb), bb=bb,
                wpool=wpool, bpool=bp, w1a=w1a, w1b=w1b, b1=b1,
                w2=w2.astype(bf16), b2=b2)


# ------------------------- pure-JAX reference (for checking) -------------------
def reference_forward(x, nbr_idx, batch_idx, params):
    """Same forward with XLA ops, same bf16 matmul inputs / f32 accumulation as the kernel."""
    bf16, f32 = jnp.bfloat16, jnp.float32

    def nbr_max(f):
        return jnp.max(f[nbr_idx], axis=1)

    def gconv(f, ws, wn, b):
        z = jnp.dot(f.astype(bf16), ws.astype(bf16), preferred_element_type=f32)
        z += jnp.dot(nbr_max(f).astype(bf16), wn.astype(bf16), preferred_element_type=f32)
        return jnp.maximum(z + b, 0.0)

    def run_line(f, prm):
        cur = gconv(f, *prm["head"])
        for blk in prm["blocks"]:
            cur = jnp.concatenate([cur, gconv(cur, *blk)], axis=1)
        return cur

    x_l = run_line(x, params["local"])                                   # (BN, 160)
    x_g = run_line(x, params["global"])                                  # (BN, 160)
    wp, bp = params["pool"]
    p = jnp.maximum(
        jnp.dot(x_g.astype(bf16), wp.astype(bf16), preferred_element_type=f32) + bp, 0.0)
    pooled = jax.ops.segment_max(p, batch_idx, num_segments=B)           # (B, 32)
    feat = jnp.concatenate([x_l, pooled[batch_idx]], axis=1)             # (BN, 192)
    w1, b1 = params["seg1"]
    h = jnp.maximum(
        jnp.dot(feat.astype(bf16), w1.astype(bf16), preferred_element_type=f32) + b1, 0.0)
    w2, b2 = params["seg2"]
    z = jnp.dot(h.astype(bf16), w2.astype(bf16), preferred_element_type=f32) + b2
    return jax.nn.log_softmax(z, axis=1)


# ---------------------------------- main ---------------------------------------
if __name__ == "__main__":
    key = jax.random.PRNGKey(0)
    kx, kp = jax.random.split(key)

    # input points (BxN) x F, like the reference forward
    x = jax.random.normal(kx, (BN, IN_FEATURE), jnp.float32)

    # deterministic ring-style edge_index: K next points within each sketch
    # TODO(synk): DynConv's dynamic kNN / stochastic-epsilon edge sampling is replaced
    # by this fixed ring neighbor table (same table for both branches).
    offs = jnp.arange(1, K_NEIGHBORS + 1)
    local = jnp.arange(N)
    nbr_local = (local[:, None] + offs[None, :]) % N                     # (N, K)
    nbr_idx = jnp.concatenate([nbr_local + b * N for b in range(B)], axis=0)
    batch_idx = jnp.repeat(jnp.arange(B), N)                             # data['batch']

    params = init_params(kp)
    fused_params = pack_params(params)

    out = sketch_two_line_forward(x, fused_params)
    out = jax.block_until_ready(out)

    assert out.shape == (BN, OUT_SEGMENT)
    # log-softmax rows must exponentiate to 1
    row_sums = jnp.sum(jnp.exp(out), axis=1)
    assert bool(jnp.all(jnp.abs(row_sums - 1.0) < 1e-3))
    # fused kernel must match the pure-JAX reference of the same forward
    ref = reference_forward(x, nbr_idx, batch_idx, params)
    err = float(jnp.max(jnp.abs(out - ref)))
    assert err < 2e-2, f"kernel/reference mismatch: max abs err = {err}"
    print("KERNEL_OK")
</pallas_src>

<mosaic_0001>
module attributes {stable_mosaic.version = 11 : i64} {
  func.func @k(%arg0: memref<8x128xf32, #tpu.memory_space<vmem>>, %arg1: memref<8x128xf32, #tpu.memory_space<vmem>>) attributes {dimension_semantics = [], scalar_prefetch = 0 : i64, scratch_operands = 0 : i64, tpu.core_type = #tpu.core_type<tc>} {
    %c0 = arith.constant 0 : index
    %c0_0 = arith.constant 0 : index
    %0 = vector.load %arg0[%c0, %c0_0] : memref<8x128xf32, #tpu.memory_space<vmem>>, vector<8x128xf32>
    %c1_i32 = arith.constant 1 : i32
    %1 = tpu.dynamic_rotate %0 by %c1_i32 dim 0 : vector<8x128xf32>, i32 -> vector<8x128xf32>
    %c0_1 = arith.constant 0 : index
    %c0_2 = arith.constant 0 : index
    %2 = vector.load %arg1[%c0_1, %c0_2] : memref<8x128xf32, #tpu.memory_space<vmem>>, vector<8x128xf32>
    tpu.vector_store %arg1[%c0_1, %c0_2], %1 {strides = array<i32>} : memref<8x128xf32, #tpu.memory_space<vmem>>, vector<8x128xf32>,
    return
  }
}

</mosaic_0001>

<llo_original>
// kernel: tpu_custom_call.1
$region0: #{tpu_custom_call.1}
  #allocation0 [shape = 'u32[]', space=smem, size = 0x4, offset = 0x4, fixed_abs, tag = 'smem constant byte address 0x4 - core index']
  #allocation1 [shape = 'u32[144,128]{1,0:T(1,128)}', space=vmem, size = 0x12000, scoped, tag = 'internal scratch']
  %s0 = inlined_call_operand.hbm [shape: f32[8,128], index: 0, kind: input, shape index: {}]
  %s1 = inlined_call_operand.hbm [shape: f32[8,128], index: 1, kind: output, shape index: {}]
  %s2 = sld [smem:[#allocation0]]
  $region18: #{tpu_custom_call.1} parent=0
    _
  %s4 = ssub.s32 1, %s2
  %s5 = scalar_select 0, %s4, %s2
  $region1: #{tpu_custom_call.1} parent=0
    #allocation2 [shape = 'u8[4096]{0}', space=vmem, size = 0x1000, scoped, tag = 'input window, operand 0, single buffered']
    #allocation3 [shape = 's32[1]{0}', space=sflag, size = 0x4, scoped, tag = 'scoped memory for tpu_custom_call.1']
    #allocation4 [shape = 's32[1]{0}', space=sflag, size = 0x4, scoped, tag = 'scoped memory for tpu_custom_call.1']
    #allocation5 [shape = 'u8[4096]{0}', space=vmem, size = 0x1000, scoped, tag = 'output window, operand 0, single buffered']
    %6 = vsyncpa [#allocation3], 0
    %7 = vsyncpa [#allocation4], 0
    // Predicated region
    $region2: #{tpu_custom_call.1} parent=1 // pred_check
      _
    $region3: #{tpu_custom_call.1} parent=1 // pred_check_branch
      %9 = sbr.rel (0) target = $region5
    $region4: #{tpu_custom_call.1} parent=1 // pred_region
      %s11 = ssub.s32 128, 128
      %12 = vsyncadd [#allocation3], %s11
      %s14 = sshll.u32 [#allocation2], 4
      %s15 = int_to_ptr.vmem [resolvable:$true] %s14
      %17 = dma.hbm_to_vmem [thread:$0]  %s0, 128, %s15, [#allocation3]
    $region5: #{tpu_custom_call.1} parent=1 // pred_fallthru
      _
    // Predicated region
    $region6: #{tpu_custom_call.1} parent=1 // pred_check
      _
    $region7: #{tpu_custom_call.1} parent=1 // pred_check_branch
      %19 = sbr.rel (0) target = $region9
    $region8: #{tpu_custom_call.1} parent=1 // pred_region
      %20 = dma.done [#allocation3], 128
    $region9: #{tpu_custom_call.1} parent=1 // pred_fallthru
      _
    %v21 = vld [vmem:[#allocation2] sm:$0xff]
    %v22 = vrot.slane %v21, 7
    %23 = vst [vmem:[#allocation5] sm:$0xff] %v22
    // Predicated region
    $region10: #{tpu_custom_call.1} parent=1 // pred_check
      _
    $region11: #{tpu_custom_call.1} parent=1 // pred_check_branch
      %25 = sbr.rel (0) target = $region13
    $region12: #{tpu_custom_call.1} parent=1 // pred_region
      %s27 = ssub.s32 128, 128
      %28 = vsyncadd [#allocation4], %s27
      %s30 = sshll.u32 [#allocation5], 4
      %s31 = int_to_ptr.vmem [resolvable:$true] %s30
      %33 = dma.vmem_to_hbm [thread:$0]  %s31, 128, %s1, [#allocation4]
    $region13: #{tpu_custom_call.1} parent=1 // pred_fallthru
      _
    // Predicated region
    $region14: #{tpu_custom_call.1} parent=1 // pred_check
      _
    $region15: #{tpu_custom_call.1} parent=1 // pred_check_branch
      %35 = sbr.rel (0) target = $region17
    $region16: #{tpu_custom_call.1} parent=1 // pred_region
      %36 = dma.done [#allocation4], 128
    $region17: #{tpu_custom_call.1} parent=1 // pred_fallthru
      _
    %37 = vsyncpa [#allocation3], 1
    %38 = vsyncpa [#allocation4], 1

</llo_original>
